<compile_context>
chip_gen: v7x
topology: tpu7x:2x2x1
jax: 0.10.0
libtpu: 0.0.40
codegen_flags: <defaults>
</compile_context>

<pallas_src>
import jax
import jax.numpy as jnp
from jax.experimental import pallas as pl
from jax.experimental.pallas import tpu as pltpu

LANES = 128
SUBLANES = 8
# Double-buffered per-step VMEM budget; conservative so the same tiling fits
# v5e's 16 MiB scoped-VMEM default as well as v6e/v7x's 32 MiB.
_VMEM_BUDGET_BYTES = 14 * 1024 * 1024


def _round_up(x, m):
    return ((x + m - 1) // m) * m


def _padded_rows(n):
    """Rows of the lane-dense [R, 128] layout for n flat elements (R % 8 == 0)."""
    return _round_up(pl.cdiv(n, LANES), SUBLANES)


def _vmem_per_step(bb, tr):
    # x block (2*bb planes) + out block (2*bb) + w block (2), each tr*128 f32,
    # double-buffered by the pipeline.
    return 2 * (4 * bb + 2) * tr * LANES * 4


def gfn_kernel(xs_ref, ws_ref, os_ref):
    # xs/os blocks: (2, bb, tr, 128); ws block: (2, tr, 128), broadcast over bb.
    xr = xs_ref[0]
    xi = xs_ref[1]
    wr = ws_ref[0]
    wi = ws_ref[1]
    os_ref[0] = xr * wr - xi * wi
    os_ref[1] = xr * wi + xi * wr


def gfn_forward(xs, ws, *, tile_rows=1024):
    """xs: [2, B, R, 128] f32 (real/imag planes); ws: [2, R, 128] f32.

    Returns [2, B, R, 128] f32 = elementwise complex product, weights broadcast
    over batch.
    """
    two, B, R, lanes = xs.shape
    assert two == 2 and lanes == LANES and ws.shape == (2, R, LANES)
    assert R % SUBLANES == 0

    # Row tile: multiple of 8, never exceeding R.
    tr = min(_round_up(int(tile_rows), SUBLANES), R)

    # Batch sub-block: largest divisor of B (capped at 8) that fits the budget.
    bb = 1
    for cand in (8, 4, 2, 1):
        c = min(cand, B)
        if B % c == 0 and _vmem_per_step(c, tr) <= _VMEM_BUDGET_BYTES:
            bb = c
            break
    # If even bb == 1 overflows the budget, shrink the row tile instead.
    while _vmem_per_step(bb, tr) > _VMEM_BUDGET_BYTES and tr > SUBLANES:
        tr = max(SUBLANES, _round_up(tr // 2, SUBLANES))

    n_row_tiles = pl.cdiv(R, tr)   # Pallas masks the (rare, <8-row) edge tile
    n_batch_tiles = pl.cdiv(B, bb)
    # Batch innermost -> weight block index unchanged across consecutive steps
    # (weights DMA'd once per row tile). Small shapes collapse to grid=(1, 1).
    grid = (n_row_tiles, n_batch_tiles)

    x_spec = pl.BlockSpec((2, bb, tr, LANES), lambda t, b: (0, b, t, 0))
    w_spec = pl.BlockSpec((2, tr, LANES), lambda t, b: (0, t, 0))

    # Memory-bound: reads 2*B x-planes + 2 weight planes (reused over batch),
    # writes 2*B output planes; 6 flops per complex element.
    np_elems = R * LANES
    cost = pl.CostEstimate(
        flops=6 * B * np_elems,
        transcendentals=0,
        bytes_accessed=(4 * B + 2) * np_elems * 4,
    )

    return pl.pallas_call(
        gfn_kernel,
        out_shape=jax.ShapeDtypeStruct((2, B, R, LANES), jnp.float32),
        grid_spec=pltpu.PrefetchScalarGridSpec(
            num_scalar_prefetch=0,
            grid=grid,
            in_specs=[x_spec, w_spec],
            out_specs=x_spec,
        ),
        compiler_params=pltpu.CompilerParams(
            dimension_semantics=("parallel", "parallel"),
        ),
        cost_estimate=cost,
        input_output_aliases={0: 0},  # xs is freshly built in the wrapper
    )(xs, ws)


class GFN:
    """JAX/Pallas port of the PyTorch GFN module."""

    def __init__(self, H, W, hidden_dim, key):
        self.H = H
        self.W = W
        self.F = W // 2 + 1
        self.G = H * self.F
        self.hidden_dim = hidden_dim
        # nn.Parameter(torch.empty(H, F, hidden, 2).normal_(std=0.02))
        self.weights = 0.02 * jax.random.normal(
            key, (H, self.F, hidden_dim, 2), dtype=jnp.float32
        )

        # Precompute the planar, padded, lane-dense weights once so each call
        # avoids a per-forward stride-2 deinterleave + pad + reshape HBM pass.
        N = self.G * hidden_dim
        self._N = N
        R = _padded_rows(N)
        self._R = R
        pad = R * LANES - N
        wr = self.weights[..., 0].reshape(N)
        wi = self.weights[..., 1].reshape(N)
        ws = jnp.stack([wr, wi])                      # [2, N]
        if pad:
            ws = jnp.pad(ws, ((0, 0), (0, pad)))
        self._ws = ws.reshape(2, R, LANES)            # [2, R, 128]

    def __call__(self, x_complex):
        """x_complex: complex64 array of shape [B, H, F, hidden_dim]."""
        B = x_complex.shape[0]
        N, R = self._N, self._R
        Np = R * LANES

        # Wrapper glue (fused by XLA with the pad/reshape when jitted).
        xr = jnp.real(x_complex).astype(jnp.float32).reshape(B, N)
        xi = jnp.imag(x_complex).astype(jnp.float32).reshape(B, N)
        xs = jnp.stack([xr, xi])                      # [2, B, N]
        if Np != N:
            xs = jnp.pad(xs, ((0, 0), (0, 0), (0, Np - N)))
        xs = xs.reshape(2, B, R, LANES)

        out = gfn_forward(xs, self._ws)

        out = out.reshape(2, B, Np)[:, :, :N]
        res = jax.lax.complex(out[0], out[1])
        return res.reshape(B, self.H, self.F, self.hidden_dim)


if __name__ == "__main__":
    key = jax.random.PRNGKey(0)
    k_w, k_xr, k_xi = jax.random.split(key, 3)

    B, H, W, hidden = 2, 8, 16, 32  # F = 9, G = 72, N = 2304
    model = GFN(H, W, hidden, k_w)

    xr = jax.random.normal(k_xr, (B, H, model.F, hidden), dtype=jnp.float32)
    xi = jax.random.normal(k_xi, (B, H, model.F, hidden), dtype=jnp.float32)
    x = jax.lax.complex(xr, xi)  # complex64

    fwd = jax.jit(model.__call__)
    out = jax.block_until_ready(fwd(x))

    # Reference: plain JAX complex elementwise multiply (same as torch forward).
    w_complex = jax.lax.complex(model.weights[..., 0], model.weights[..., 1])
    ref = x * w_complex[None, ...]

    assert out.shape == (B, H, model.F, hidden)
    assert out.dtype == jnp.complex64
    assert jnp.allclose(out, ref, atol=1e-5, rtol=1e-5)

    print("KERNEL_OK")
</pallas_src>

<mosaic_0001>
module attributes {stable_mosaic.version = 11 : i64} {
  func.func @gfn_kernel(%arg0: i32, %arg1: i32, %arg2: memref<2x2x24x128xf32, #tpu.memory_space<vmem>>, %arg3: memref<2x24x128xf32, #tpu.memory_space<vmem>>, %arg4: memref<2x2x24x128xf32, #tpu.memory_space<vmem>>) attributes {dimension_semantics = [#tpu.dimension_semantics<parallel>, #tpu.dimension_semantics<parallel>], iteration_bounds = array<i64: 1, 1>, scalar_prefetch = 0 : i64, scratch_operands = 0 : i64, tpu.core_type = #tpu.core_type<tc>, window_params = [{transform_indices = @transform_0, window_bounds = array<i64: 2, 2, 24, 128>}, {transform_indices = @transform_1, window_bounds = array<i64: 2, 24, 128>}, {transform_indices = @transform_2, window_bounds = array<i64: 2, 2, 24, 128>}]} {
    %c0 = arith.constant 0 : index
    %c0_0 = arith.constant 0 : index
    %c0_1 = arith.constant 0 : index
    %c0_2 = arith.constant 0 : index
    %0 = vector.load %arg2[%c0, %c0_0, %c0_1, %c0_2] : memref<2x2x24x128xf32, #tpu.memory_space<vmem>>, vector<1x2x24x128xf32>
    %1 = vector.shape_cast %0 : vector<1x2x24x128xf32> to vector<2x24x128xf32>
    %c1 = arith.constant 1 : index
    %c0_3 = arith.constant 0 : index
    %c0_4 = arith.constant 0 : index
    %c0_5 = arith.constant 0 : index
    %2 = vector.load %arg2[%c1, %c0_3, %c0_4, %c0_5] : memref<2x2x24x128xf32, #tpu.memory_space<vmem>>, vector<1x2x24x128xf32>
    %3 = vector.shape_cast %2 : vector<1x2x24x128xf32> to vector<2x24x128xf32>
    %c0_6 = arith.constant 0 : index
    %c0_7 = arith.constant 0 : index
    %c0_8 = arith.constant 0 : index
    %4 = vector.load %arg3[%c0_6, %c0_7, %c0_8] : memref<2x24x128xf32, #tpu.memory_space<vmem>>, vector<1x24x128xf32>
    %5 = vector.shape_cast %4 : vector<1x24x128xf32> to vector<24x128xf32>
    %c1_9 = arith.constant 1 : index
    %c0_10 = arith.constant 0 : index
    %c0_11 = arith.constant 0 : index
    %6 = vector.load %arg3[%c1_9, %c0_10, %c0_11] : memref<2x24x128xf32, #tpu.memory_space<vmem>>, vector<1x24x128xf32>
    %7 = vector.shape_cast %6 : vector<1x24x128xf32> to vector<24x128xf32>
    %8 = vector.shape_cast %5 : vector<24x128xf32> to vector<1x24x128xf32>
    %9 = vector.broadcast %8 : vector<1x24x128xf32> to vector<2x24x128xf32>
    %10 = arith.mulf %1, %9 : vector<2x24x128xf32>
    %11 = vector.shape_cast %7 : vector<24x128xf32> to vector<1x24x128xf32>
    %12 = vector.broadcast %11 : vector<1x24x128xf32> to vector<2x24x128xf32>
    %13 = arith.mulf %3, %12 : vector<2x24x128xf32>
    %14 = arith.subf %10, %13 : vector<2x24x128xf32>
    %c0_12 = arith.constant 0 : index
    %c0_13 = arith.constant 0 : index
    %c0_14 = arith.constant 0 : index
    %c0_15 = arith.constant 0 : index
    %15 = vector.load %arg4[%c0_12, %c0_13, %c0_14, %c0_15] : memref<2x2x24x128xf32, #tpu.memory_space<vmem>>, vector<1x2x24x128xf32>
    %16 = vector.shape_cast %15 : vector<1x2x24x128xf32> to vector<2x24x128xf32>
    %17 = vector.shape_cast %14 : vector<2x24x128xf32> to vector<1x2x24x128xf32>
    tpu.vector_store %arg4[%c0_12, %c0_13, %c0_14, %c0_15], %17 {strides = array<i32>} : memref<2x2x24x128xf32, #tpu.memory_space<vmem>>, vector<1x2x24x128xf32>,
    %18 = vector.shape_cast %7 : vector<24x128xf32> to vector<1x24x128xf32>
    %19 = vector.broadcast %18 : vector<1x24x128xf32> to vector<2x24x128xf32>
    %20 = arith.mulf %1, %19 : vector<2x24x128xf32>
    %21 = vector.shape_cast %5 : vector<24x128xf32> to vector<1x24x128xf32>
    %22 = vector.broadcast %21 : vector<1x24x128xf32> to vector<2x24x128xf32>
    %23 = arith.mulf %3, %22 : vector<2x24x128xf32>
    %24 = arith.addf %20, %23 : vector<2x24x128xf32>
    %c1_16 = arith.constant 1 : index
    %c0_17 = arith.constant 0 : index
    %c0_18 = arith.constant 0 : index
    %c0_19 = arith.constant 0 : index
    %25 = vector.load %arg4[%c1_16, %c0_17, %c0_18, %c0_19] : memref<2x2x24x128xf32, #tpu.memory_space<vmem>>, vector<1x2x24x128xf32>
    %26 = vector.shape_cast %25 : vector<1x2x24x128xf32> to vector<2x24x128xf32>
    %27 = vector.shape_cast %24 : vector<2x24x128xf32> to vector<1x2x24x128xf32>
    tpu.vector_store %arg4[%c1_16, %c0_17, %c0_18, %c0_19], %27 {strides = array<i32>} : memref<2x2x24x128xf32, #tpu.memory_space<vmem>>, vector<1x2x24x128xf32>,
    return
  }
  func.func @transform_0(%arg0: i32, %arg1: i32) -> (i32, i32, i32, i32) {
    %c0_i32 = arith.constant 0 : i32
    %c0_i32_0 = arith.constant 0 : i32
    %c0_i32_1 = arith.constant 0 : i32
    return %c0_i32, %arg1, %arg0, %c0_i32_0 : i32, i32, i32, i32
  }
  func.func @transform_1(%arg0: i32, %arg1: i32) -> (i32, i32, i32) {
    %c0_i32 = arith.constant 0 : i32
    %c0_i32_0 = arith.constant 0 : i32
    %c0_i32_1 = arith.constant 0 : i32
    return %c0_i32, %arg0, %c0_i32_0 : i32, i32, i32
  }
  func.func @transform_2(%arg0: i32, %arg1: i32) -> (i32, i32, i32, i32) {
    %c0_i32 = arith.constant 0 : i32
    %c0_i32_0 = arith.constant 0 : i32
    %c0_i32_1 = arith.constant 0 : i32
    return %c0_i32, %arg1, %arg0, %c0_i32_0 : i32, i32, i32, i32
  }
}

</mosaic_0001>

<llo_original>
// kernel: custom-call.1
$region0: #{custom-call.1}
  %s0 = inlined_call_operand.hbm [shape: c64[2,8,9,32], index: 0, kind: input, shape index: {}]
  %s1 = inlined_call_operand.vmem [shape: f32[2,8,9,32], index: 1, kind: output, shape index: {}]
  %s2 = scalar_lea.hbm %s0, 2304
  $region1: #{custom-call.1} parent=0
    #allocation0 [shape = 's32[1]{0}', space=sflag, size = 0x4, scoped, tag = 'scoped memory for custom-call.1']
    %3 = vsyncpa [#allocation0], 0
    %s4 = sshll.u32 %s1, 4
    %s5 = int_to_ptr.vmem [resolvable:$true] %s4
    %7 = dma.hbm_to_vmem [thread:$0]  %s2, 2304, %s5, [#allocation0]
    %8 = dma.done [#allocation0], 2304
    %9 = vsyncpa [#allocation0], 1

// kernel: custom-call
$region0: #{custom-call}
  %s0 = inlined_call_operand.hbm [shape: c64[2,8,9,32], index: 0, kind: input, shape index: {}]
  %s1 = inlined_call_operand.vmem [shape: f32[2,8,9,32], index: 1, kind: output, shape index: {}]
  $region1: #{custom-call} parent=0
    #allocation0 [shape = 's32[1]{0}', space=sflag, size = 0x4, scoped, tag = 'scoped memory for custom-call']
    %2 = vsyncpa [#allocation0], 0
    %s3 = sshll.u32 %s1, 4
    %s4 = int_to_ptr.vmem [resolvable:$true] %s3
    %6 = dma.hbm_to_vmem [thread:$0]  %s0, 2304, %s4, [#allocation0]
    %7 = dma.done [#allocation0], 2304
    %8 = vsyncpa [#allocation0], 1

// kernel: custom-call.2
$region0: #{custom-call.2}
  %s0 = inlined_call_operand.vmem [shape: f32[2,8,9,32], index: 0, kind: input, shape index: {}]
  %s1 = inlined_call_operand.vmem [shape: f32[2,8,9,32], index: 1, kind: input, shape index: {}]
  %s2 = inlined_call_operand.vmem [shape: c64[2,8,9,32], index: 2, kind: output, shape index: {}]
  %s4 = scalar_lea.vmem %s2, 256
  %v5 = vld [vmem:[%s0] sm:$0xff]
  %6 = vst [vmem:[%s2] sm:$0xff] %v5
  %s7 = scalar_lea.vmem %s2, 8
  %s8 = scalar_lea.vmem %s0, 8
  %v9 = vld [vmem:[%s8] sm:$0xff]
  %10 = vst [vmem:[%s7] sm:$0xff] %v9
  %s11 = scalar_lea.vmem %s2, 16
  %s12 = scalar_lea.vmem %s0, 16
  %v13 = vld [vmem:[%s12] sm:$0xff]
  %14 = vst [vmem:[%s11] sm:$0xff] %v13
  %s15 = scalar_lea.vmem %s2, 24
  %s16 = scalar_lea.vmem %s0, 24
  %v17 = vld [vmem:[%s16] sm:$0xff]
  %18 = vst [vmem:[%s15] sm:$0xff] %v17
  %s19 = scalar_lea.vmem %s2, 32
  %s20 = scalar_lea.vmem %s0, 32
  %v21 = vld [vmem:[%s20] sm:$0xff]
  %22 = vst [vmem:[%s19] sm:$0xff] %v21
  %s23 = scalar_lea.vmem %s2, 40
  %s24 = scalar_lea.vmem %s0, 40
  %v25 = vld [vmem:[%s24] sm:$0xff]
  %26 = vst [vmem:[%s23] sm:$0xff] %v25
  %s27 = scalar_lea.vmem %s2, 48
  %s28 = scalar_lea.vmem %s0, 48
  %v29 = vld [vmem:[%s28] sm:$0xff]
  %30 = vst [vmem:[%s27] sm:$0xff] %v29
  %s31 = scalar_lea.vmem %s2, 56
  %s32 = scalar_lea.vmem %s0, 56
  %v33 = vld [vmem:[%s32] sm:$0xff]
  %34 = vst [vmem:[%s31] sm:$0xff] %v33
  %s35 = scalar_lea.vmem %s2, 64
  %s36 = scalar_lea.vmem %s0, 64
  %v37 = vld [vmem:[%s36] sm:$0xff]
  %38 = vst [vmem:[%s35] sm:$0xff] %v37
  %s39 = scalar_lea.vmem %s2, 72
  %s40 = scalar_lea.vmem %s0, 72
  %v41 = vld [vmem:[%s40] sm:$0xff]
  %42 = vst [vmem:[%s39] sm:$0xff] %v41
  %s43 = scalar_lea.vmem %s2, 80
  %s44 = scalar_lea.vmem %s0, 80
  %v45 = vld [vmem:[%s44] sm:$0xff]
  %46 = vst [vmem:[%s43] sm:$0xff] %v45
  %s47 = scalar_lea.vmem %s2, 88
  %s48 = scalar_lea.vmem %s0, 88
  %v49 = vld [vmem:[%s48] sm:$0xff]
  %50 = vst [vmem:[%s47] sm:$0xff] %v49
  %s51 = scalar_lea.vmem %s2, 96
  %s52 = scalar_lea.vmem %s0, 96
  %v53 = vld [vmem:[%s52] sm:$0xff]
  %54 = vst [vmem:[%s51] sm:$0xff] %v53
  %s55 = scalar_lea.vmem %s2, 104
  %s56 = scalar_lea.vmem %s0, 104
  %v57 = vld [vmem:[%s56] sm:$0xff]
  %58 = vst [vmem:[%s55] sm:$0xff] %v57
  %s59 = scalar_lea.vmem %s2, 112
  %s60 = scalar_lea.vmem %s0, 112
  %v61 = vld [vmem:[%s60] sm:$0xff]
  %62 = vst [vmem:[%s59] sm:$0xff] %v61
  %s63 = scalar_lea.vmem %s2, 120
  %s64 = scalar_lea.vmem %s0, 120
  %v65 = vld [vmem:[%s64] sm:$0xff]
  %66 = vst [vmem:[%s63] sm:$0xff] %v65
  %s67 = scalar_lea.vmem %s2, 128
  %s68 = scalar_lea.vmem %s0, 128
  %v69 = vld [vmem:[%s68] sm:$0xff]
  %70 = vst [vmem:[%s67] sm:$0xff] %v69
  %s71 = scalar_lea.vmem %s2, 136
  %s72 = scalar_lea.vmem %s0, 136
  %v73 = vld [vmem:[%s72] sm:$0xff]
  %74 = vst [vmem:[%s71] sm:$0xff] %v73
  %s75 = scalar_lea.vmem %s2, 144
  %s76 = scalar_lea.vmem %s0, 144
  %v77 = vld [vmem:[%s76] sm:$0xff]
  %78 = vst [vmem:[%s75] sm:$0xff] %v77
  %s79 = scalar_lea.vmem %s2, 152
  %s80 = scalar_lea.vmem %s0, 152
  %v81 = vld [vmem:[%s80] sm:$0xff]
  %82 = vst [vmem:[%s79] sm:$0xff] %v81
  %s83 = scalar_lea.vmem %s2, 160
  %s84 = scalar_lea.vmem %s0, 160
  %v85 = vld [vmem:[%s84] sm:$0xff]
  %86 = vst [vmem:[%s83] sm:$0xff] %v85
  %s87 = scalar_lea.vmem %s2, 168
  %s88 = scalar_lea.vmem %s0, 168
  %v89 = vld [vmem:[%s88] sm:$0xff]
  %90 = vst [vmem:[%s87] sm:$0xff] %v89
  %s91 = scalar_lea.vmem %s2, 176
  %s92 = scalar_lea.vmem %s0, 176
  %v93 = vld [vmem:[%s92] sm:$0xff]
  %94 = vst [vmem:[%s91] sm:$0xff] %v93
  %s95 = scalar_lea.vmem %s2, 184
  %s96 = scalar_lea.vmem %s0, 184
  %v97 = vld [vmem:[%s96] sm:$0xff]
  %98 = vst [vmem:[%s95] sm:$0xff] %v97
  %s99 = scalar_lea.vmem %s2, 192
  %s100 = scalar_lea.vmem %s0, 192
  %v101 = vld [vmem:[%s100] sm:$0xff]
  %102 = vst [vmem:[%s99] sm:$0xff] %v101
  %s103 = scalar_lea.vmem %s2, 200
  %s104 = scalar_lea.vmem %s0, 200
  %v105 = vld [vmem:[%s104] sm:$0xff]
  %106 = vst [vmem:[%s103] sm:$0xff] %v105
  %s107 = scalar_lea.vmem %s2, 208
  %s108 = scalar_lea.vmem %s0, 208
  %v109 = vld [vmem:[%s108] sm:$0xff]
  %110 = vst [vmem:[%s107] sm:$0xff] %v109
  %s111 = scalar_lea.vmem %s2, 216
  %s112 = scalar_lea.vmem %s0, 216
  %v113 = vld [vmem:[%s112] sm:$0xff]
  %114 = vst [vmem:[%s111] sm:$0xff] %v113
  %s115 = scalar_lea.vmem %s2, 224
  %s116 = scalar_lea.vmem %s0, 224
  %v117 = vld [vmem:[%s116] sm:$0xff]
  %118 = vst [vmem:[%s115] sm:$0xff] %v117
  %s119 = scalar_lea.vmem %s2, 232
  %s120 = scalar_lea.vmem %s0, 232
  %v121 = vld [vmem:[%s120] sm:$0xff]
  %122 = vst [vmem:[%s119] sm:$0xff] %v121
  %s123 = scalar_lea.vmem %s2, 240
  %s124 = scalar_lea.vmem %s0, 240
  %v125 = vld [vmem:[%s124] sm:$0xff]
  %126 = vst [vmem:[%s123] sm:$0xff] %v125
  %s127 = scalar_lea.vmem %s2, 248
  %s128 = scalar_lea.vmem %s0, 248
  %v129 = vld [vmem:[%s128] sm:$0xff]
  %130 = vst [vmem:[%s127] sm:$0xff] %v129
  %v131 = vld [vmem:[%s1] sm:$0xff]
  %132 = vst [vmem:[%s4] sm:$0xff] %v131
  %s133 = scalar_lea.vmem %s4, 8
  %s134 = scalar_lea.vmem %s1, 8
  %v135 = vld [vmem:[%s134] sm:$0xff]
  %136 = vst [vmem:[%s133] sm:$0xff] %v135
  %s137 = scalar_lea.vmem %s4, 16
  %s138 = scalar_lea.vmem %s1, 16
  %v139 = vld [vmem:[%s138] sm:$0xff]
  %140 = vst [vmem:[%s137] sm:$0xff] %v139
  %s141 = scalar_lea.vmem %s4, 24
  %s142 = scalar_lea.vmem %s1, 24
  %v143 = vld [vmem:[%s142] sm:$0xff]
  %144 = vst [vmem:[%s141] sm:$0xff] %v143
  %s145 = scalar_lea.vmem %s4, 32
  %s146 = scalar_lea.vmem %s1, 32
  %v147 = vld [vmem:[%s146] sm:$0xff]
  %148 = vst [vmem:[%s145] sm:$0xff] %v147
  %s149 = scalar_lea.vmem %s4, 40
  %s150 = scalar_lea.vmem %s1, 40
  %v151 = vld [vmem:[%s150] sm:$0xff]
  %152 = vst [vmem:[%s149] sm:$0xff] %v151
  %s153 = scalar_lea.vmem %s4, 48
  %s154 = scalar_lea.vmem %s1, 48
  %v155 = vld [vmem:[%s154] sm:$0xff]
  %156 = vst [vmem:[%s153] sm:$0xff] %v155
  %s157 = scalar_lea.vmem %s4, 56
  %s158 = scalar_lea.vmem %s1, 56
  %v159 = vld [vmem:[%s158] sm:$0xff]
  %160 = vst [vmem:[%s157] sm:$0xff] %v159
  %s161 = scalar_lea.vmem %s4, 64
  %s162 = scalar_lea.vmem %s1, 64
  %v163 = vld [vmem:[%s162] sm:$0xff]
  %164 = vst [vmem:[%s161] sm:$0xff] %v163
  %s165 = scalar_lea.vmem %s4, 72
  %s166 = scalar_lea.vmem %s1, 72
  %v167 = vld [vmem:[%s166] sm:$0xff]
  %168 = vst [vmem:[%s165] sm:$0xff] %v167
  %s169 = scalar_lea.vmem %s4, 80
  %s170 = scalar_lea.vmem %s1, 80
  %v171 = vld [vmem:[%s170] sm:$0xff]
  %172 = vst [vmem:[%s169] sm:$0xff] %v171
  %s173 = scalar_lea.vmem %s4, 88
  %s174 = scalar_lea.vmem %s1, 88
  %v175 = vld [vmem:[%s174] sm:$0xff]
  %176 = vst [vmem:[%s173] sm:$0xff] %v175
  %s177 = scalar_lea.vmem %s4, 96
  %s178 = scalar_lea.vmem %s1, 96
  %v179 = vld [vmem:[%s178] sm:$0xff]
  %180 = vst [vmem:[%s177] sm:$0xff] %v179
  %s181 = scalar_lea.vmem %s4, 104
  %s182 = scalar_lea.vmem %s1, 104
  %v183 = vld [vmem:[%s182] sm:$0xff]
  %184 = vst [vmem:[%s181] sm:$0xff] %v183
  %s185 = scalar_lea.vmem %s4, 112
  %s186 = scalar_lea.vmem %s1, 112
  %v187 = vld [vmem:[%s186] sm:$0xff]
  %188 = vst [vmem:[%s185] sm:$0xff] %v187
  %s189 = scalar_lea.vmem %s4, 120
  %s190 = scalar_lea.vmem %s1, 120
  %v191 = vld [vmem:[%s190] sm:$0xff]
  %192 = vst [vmem:[%s189] sm:$0xff] %v191
  %s193 = scalar_lea.vmem %s4, 128
  %s194 = scalar_lea.vmem %s1, 128
  %v195 = vld [vmem:[%s194] sm:$0xff]
  %196 = vst [vmem:[%s193] sm:$0xff] %v195
  %s197 = scalar_lea.vmem %s4, 136
  %s198 = scalar_lea.vmem %s1, 136
  %v199 = vld [vmem:[%s198] sm:$0xff]
  %200 = vst [vmem:[%s197] sm:$0xff] %v199
  %s201 = scalar_lea.vmem %s4, 144
  %s202 = scalar_lea.vmem %s1, 144
  %v203 = vld [vmem:[%s202] sm:$0xff]
  %204 = vst [vmem:[%s201] sm:$0xff] %v203
  %s205 = scalar_lea.vmem %s4, 152
  %s206 = scalar_lea.vmem %s1, 152
  %v207 = vld [vmem:[%s206] sm:$0xff]
  %208 = vst [vmem:[%s205] sm:$0xff] %v207
  %s209 = scalar_lea.vmem %s4, 160
  %s210 = scalar_lea.vmem %s1, 160
  %v211 = vld [vmem:[%s210] sm:$0xff]
  %212 = vst [vmem:[%s209] sm:$0xff] %v211
  %s213 = scalar_lea.vmem %s4, 168
  %s214 = scalar_lea.vmem %s1, 168
  %v215 = vld [vmem:[%s214] sm:$0xff]
  %216 = vst [vmem:[%s213] sm:$0xff] %v215
  %s217 = scalar_lea.vmem %s4, 176
  %s218 = scalar_lea.vmem %s1, 176
  %v219 = vld [vmem:[%s218] sm:$0xff]
  %220 = vst [vmem:[%s217] sm:$0xff] %v219
  %s221 = scalar_lea.vmem %s4, 184
  %s222 = scalar_lea.vmem %s1, 184
  %v223 = vld [vmem:[%s222] sm:$0xff]
  %224 = vst [vmem:[%s221] sm:$0xff] %v223
  %s225 = scalar_lea.vmem %s4, 192
  %s226 = scalar_lea.vmem %s1, 192
  %v227 = vld [vmem:[%s226] sm:$0xff]
  %228 = vst [vmem:[%s225] sm:$0xff] %v227
  %s229 = scalar_lea.vmem %s4, 200
  %s230 = scalar_lea.vmem %s1, 200
  %v231 = vld [vmem:[%s230] sm:$0xff]
  %232 = vst [vmem:[%s229] sm:$0xff] %v231
  %s233 = scalar_lea.vmem %s4, 208
  %s234 = scalar_lea.vmem %s1, 208
  %v235 = vld [vmem:[%s234] sm:$0xff]
  %236 = vst [vmem:[%s233] sm:$0xff] %v235
  %s237 = scalar_lea.vmem %s4, 216
  %s238 = scalar_lea.vmem %s1, 216
  %v239 = vld [vmem:[%s238] sm:$0xff]
  %240 = vst [vmem:[%s237] sm:$0xff] %v239
  %s241 = scalar_lea.vmem %s4, 224
  %s242 = scalar_lea.vmem %s1, 224
  %v243 = vld [vmem:[%s242] sm:$0xff]
  %244 = vst [vmem:[%s241] sm:$0xff] %v243
  %s245 = scalar_lea.vmem %s4, 232
  %s246 = scalar_lea.vmem %s1, 232
  %v247 = vld [vmem:[%s246] sm:$0xff]
  %248 = vst [vmem:[%s245] sm:$0xff] %v247
  %s249 = scalar_lea.vmem %s4, 240
  %s250 = scalar_lea.vmem %s1, 240
  %v251 = vld [vmem:[%s250] sm:$0xff]
  %252 = vst [vmem:[%s249] sm:$0xff] %v251
  %s253 = scalar_lea.vmem %s4, 248
  %s254 = scalar_lea.vmem %s1, 248
  %v255 = vld [vmem:[%s254] sm:$0xff]
  %256 = vst [vmem:[%s253] sm:$0xff] %v255

// kernel: a_call__.1
$region0: #{a_call__.1}
  #allocation0 [shape = 'u32[]', space=smem, size = 0x4, offset = 0x4, fixed_abs, tag = 'smem constant byte address 0x4 - core index']
  #allocation1 [shape = 'u32[144,128]{1,0:T(1,128)}', space=vmem, size = 0x12000, scoped, tag = 'internal scratch']
  %s0 = inlined_call_operand.vmem [shape: f32[2,2,24,128], index: 0, kind: input, shape index: {}, may-alias: {0,2}]
  %s1 = inlined_call_operand.vmem [shape: f32[2,24,128], index: 1, kind: input, shape index: {}]
  %s2 = inlined_call_operand.vmem [shape: f32[2,2,24,128], index: 2, kind: output, shape index: {}, may-alias: {0,2}]
  %s3 = sld [smem:[#allocation0]]
  $region18: #{a_call__.1} parent=0
    _
  %s5 = ssub.s32 1, %s3
  %s6 = scalar_select 0, %s5, %s3
  // Predicated region
  $region2: #{a_call__.1} parent=0 // pred_check
    _
  $region3: #{a_call__.1} parent=0 // pred_check_branch
    %8 = sbr.rel (0) target = $region5
  $region4: #{a_call__.1} parent=0 // pred_region
    _
  $region5: #{a_call__.1} parent=0 // pred_fallthru
    _
  // Predicated region
  $region6: #{a_call__.1} parent=0 // pred_check
    _
  $region7: #{a_call__.1} parent=0 // pred_check_branch
    %10 = sbr.rel (0) target = $region9
  $region8: #{a_call__.1} parent=0 // pred_region
    _
  $region9: #{a_call__.1} parent=0 // pred_fallthru
    _
  %v11 = vld [vmem:[%s0] sm:$0xff]
  %v12 = vld [vmem:[%s0 + $0x8] sm:$0xff]
  %v13 = vld [vmem:[%s0 + $0x10] sm:$0xff]
  %v14 = vld [vmem:[%s0 + $0x18] sm:$0xff]
  %v15 = vld [vmem:[%s0 + $0x20] sm:$0xff]
  %v16 = vld [vmem:[%s0 + $0x28] sm:$0xff]
  %s17 = scalar_lea.vmem %s0, 48
  %v18 = vld [vmem:[%s17] sm:$0xff]
  %v19 = vld [vmem:[%s17 + $0x8] sm:$0xff]
  %v20 = vld [vmem:[%s17 + $0x10] sm:$0xff]
  %v21 = vld [vmem:[%s17 + $0x18] sm:$0xff]
  %v22 = vld [vmem:[%s17 + $0x20] sm:$0xff]
  %v23 = vld [vmem:[%s17 + $0x28] sm:$0xff]
  %v24 = vld [vmem:[%s1] sm:$0xff]
  %v25 = vld [vmem:[%s1 + $0x8] sm:$0xff]
  %v26 = vld [vmem:[%s1 + $0x10] sm:$0xff]
  %s27 = scalar_lea.vmem %s1, 24
  %v28 = vld [vmem:[%s27] sm:$0xff]
  %v29 = vld [vmem:[%s27 + $0x8] sm:$0xff]
  %v30 = vld [vmem:[%s27 + $0x10] sm:$0xff]
  %v31 = vmul.f32 %v11, %v24
  %v32 = vmul.f32 %v12, %v25
  %v33 = vmul.f32 %v13, %v26
  %v34 = vmul.f32 %v14, %v24
  %v35 = vmul.f32 %v15, %v25
  %v36 = vmul.f32 %v16, %v26
  %v37 = vmul.f32 %v18, %v28
  %v38 = vmul.f32 %v19, %v29
  %v39 = vmul.f32 %v20, %v30
  %v40 = vmul.f32 %v21, %v28
  %v41 = vmul.f32 %v22, %v29
  %v42 = vmul.f32 %v23, %v30
  %v43 = vsub.f32 %v31, %v37
  %v44 = vsub.f32 %v32, %v38
  %v45 = vsub.f32 %v33, %v39
  %v46 = vsub.f32 %v34, %v40
  %v47 = vsub.f32 %v35, %v41
  %v48 = vsub.f32 %v36, %v42
  %49 = vst [vmem:[%s2] sm:$0xff] %v43
  %50 = vst [vmem:[%s2 + $0x8] sm:$0xff] %v44
  %51 = vst [vmem:[%s2 + $0x10] sm:$0xff] %v45
  %52 = vst [vmem:[%s2 + $0x18] sm:$0xff] %v46
  %53 = vst [vmem:[%s2 + $0x20] sm:$0xff] %v47
  %54 = vst [vmem:[%s2 + $0x28] sm:$0xff] %v48
  %v55 = vmul.f32 %v11, %v28
  %v56 = vmul.f32 %v12, %v29
  %v57 = vmul.f32 %v13, %v30
  %v58 = vmul.f32 %v14, %v28
  %v59 = vmul.f32 %v15, %v29
  %v60 = vmul.f32 %v16, %v30
  %v61 = vmul.f32 %v18, %v24
  %v62 = vmul.f32 %v19, %v25
  %v63 = vmul.f32 %v20, %v26
  %v64 = vmul.f32 %v21, %v24
  %v65 = vmul.f32 %v22, %v25
  %v66 = vmul.f32 %v23, %v26
  %v67 = vadd.f32 %v55, %v61
  %v68 = vadd.f32 %v56, %v62
  %v69 = vadd.f32 %v57, %v63
  %v70 = vadd.f32 %v58, %v64
  %v71 = vadd.f32 %v59, %v65
  %v72 = vadd.f32 %v60, %v66
  %s73 = scalar_lea.vmem %s2, 48
  %74 = vst [vmem:[%s73] sm:$0xff] %v67
  %75 = vst [vmem:[%s73 + $0x8] sm:$0xff] %v68
  %76 = vst [vmem:[%s73 + $0x10] sm:$0xff] %v69
  %77 = vst [vmem:[%s73 + $0x18] sm:$0xff] %v70
  %78 = vst [vmem:[%s73 + $0x20] sm:$0xff] %v71
  %79 = vst [vmem:[%s73 + $0x28] sm:$0xff] %v72
  // Predicated region
  $region10: #{a_call__.1} parent=0 // pred_check
    _
  $region11: #{a_call__.1} parent=0 // pred_check_branch
    %81 = sbr.rel (0) target = $region13
  $region12: #{a_call__.1} parent=0 // pred_region
    _
  $region13: #{a_call__.1} parent=0 // pred_fallthru
    _
  // Predicated region
  $region14: #{a_call__.1} parent=0 // pred_check
    _
  $region15: #{a_call__.1} parent=0 // pred_check_branch
    %83 = sbr.rel (0) target = $region17
  $region16: #{a_call__.1} parent=0 // pred_region
    _
  $region17: #{a_call__.1} parent=0 // pred_fallthru
    _

</llo_original>
